<compile_context>
chip_gen: v7x
topology: tpu7x:2x2x1
jax: 0.10.0
libtpu: 0.0.40
codegen_flags: <defaults>
</compile_context>

<pallas_src>
import numpy as np

import jax
import jax.numpy as jnp
from jax.experimental import pallas as pl
from jax.experimental.pallas import tpu as pltpu

QDIM = 4
UDIM = 3
HIDDEN = (32, 32)

# Lane-dim compute chunk: 256 fills the 256-wide MXU on v6e/v7x and keeps the
# per-chunk live vregs well under the 64-vreg file.
CHUNK = 256
# Cap on the per-grid-step DMA block (lanes). Blocks stay a few hundred KiB at
# most — trivially inside VMEM on every generation (64 MiB v7x, 128 MiB v5e/v6e).
MAX_TB = 2048

# Packed input rows: q (QDIM) | ones (1) | u (UDIM)  ->  one 8-sublane tile.
N_IN = QDIM + 1 + UDIM

# Trace-time constant: permutation that reorders output units from
# k = i*UDIM + j (torch .view row-major) to k' = j*QDIM + i.
_PERM = np.arange(QDIM * UDIM).reshape(QDIM, UDIM).T.reshape(-1)


def _choose_tb(batch):
    """Per-grid-step lane tile: multiple of CHUNK, capped at MAX_TB, and at
    most ~half the batch so the grid has >= 2 steps whenever possible (so the
    "parallel" batch axis shards across v7x's two TensorCores; no-op on
    v5e/v6e which have a single TensorCore)."""
    half = -(-max(batch, 1) // 2)                 # ceil(batch / 2)
    half_rounded = -(-half // CHUNK) * CHUNK      # round up to CHUNK
    return int(min(MAX_TB, max(CHUNK, half_rounded)))


def _force_kernel(x_ref, w0_ref, w1_ref, b1_ref, wo_ref, bo_ref, f_ref):
    """f[:, b] = (ResMLP(q[:, b]).reshape(QDIM, UDIM)) @ u[:, b], batch on lanes.

    x_ref : [8, TB]            packed [q; ones; u]
    w0_ref: [H0, 8]            W0^T with b0 folded into the ones column, zero
                               columns over the u rows
    w1_ref: [H1, H0]           W1^T
    b1_ref: [H1, CHUNK]        lane-pre-broadcast bias
    wo_ref: [QDIM*UDIM, H1]    Wout^T, rows permuted to j-major order
    bo_ref: [QDIM*UDIM, CHUNK] permuted, lane-pre-broadcast bias
    f_ref : [QDIM, TB]
    """
    w0 = w0_ref[...]
    w1 = w1_ref[...]
    b1 = b1_ref[...]
    wo = wo_ref[...]
    bo = bo_ref[...]

    n_chunks = x_ref.shape[-1] // CHUNK   # static

    # Static loop over lane chunks: decouples the DMA tile (TB) from the
    # compute tile (CHUNK) so vreg pressure stays bounded while per-step
    # transfers stay large. Nothing is carried across chunks.
    for c in range(n_chunks):
        lo = c * CHUNK
        x = x_ref[:, lo:lo + CHUNK]                                   # [8, CHUNK]

        # --- ResMLP forward, lane-dense activations [H, CHUNK] --------------
        # Layer 0: bias folded via the ones row; u rows hit zero columns.
        h = jnp.tanh(jnp.dot(w0, x, preferred_element_type=jnp.float32))
        h = h + jnp.tanh(jnp.dot(w1, h, preferred_element_type=jnp.float32) + b1)
        bflat = jnp.dot(wo, h, preferred_element_type=jnp.float32) + bo  # [12, CHUNK]

        # --- Bmat @ u as UDIM sublane-broadcast FMAs -------------------------
        # bflat row j*QDIM + i == Bmat[b, i, j]; u_j lives in packed row QDIM+1+j.
        f = bflat[0:QDIM, :] * x[QDIM + 1:QDIM + 2, :]
        for j in range(1, UDIM):          # static unrolled, UDIM = 3
            f = f + bflat[j * QDIM:(j + 1) * QDIM, :] * x[QDIM + 1 + j:QDIM + 2 + j, :]

        f_ref[:, lo:lo + CHUNK] = f.astype(f_ref.dtype)   # full-lane stores


def init_params(key):
    """Deterministic params mimicking torch.nn.Linear default init."""
    def linear(k, fan_in, fan_out):
        kw, kb = jax.random.split(k)
        bound = 1.0 / float(fan_in) ** 0.5
        w = jax.random.uniform(kw, (fan_in, fan_out), jnp.float32, -bound, bound)
        b = jax.random.uniform(kb, (1, fan_out), jnp.float32, -bound, bound)
        return w, b

    k0, k1, k2 = jax.random.split(key, 3)
    w0, b0 = linear(k0, QDIM, HIDDEN[0])
    w1, b1 = linear(k1, HIDDEN[0], HIDDEN[1])
    wo, bo = linear(k2, HIDDEN[1], QDIM * UDIM)
    return w0, b0, w1, b1, wo, bo


@jax.jit
def control_affine_force(q, v, u, w0, b0, w1, b1, wo, bo):
    """Pallas implementation of ControlAffineForceNet.forward(q, v, u)."""
    del v  # v is accepted but unused by the torch forward pass
    B = q.shape[0]
    H0, H1 = HIDDEN

    TB = _choose_tb(B)
    # Pad only when the whole batch is smaller than one lane chunk (so the
    # block never exceeds the array extent); for B >= CHUNK no pad/slice pass.
    Bp = max(B, TB)
    pad = Bp - B

    # Single packed input (one streaming DMA per grid step), batch on lanes.
    x = jnp.concatenate([q.T, jnp.ones((1, B), jnp.float32), u.T], axis=0)  # [8, B]
    if pad:
        x = jnp.pad(x, ((0, 0), (0, pad)))

    # Resident weights: [out, in] layout, bias folded / lane-pre-broadcast.
    w0_aug = jnp.concatenate(
        [w0.T, b0.T, jnp.zeros((H0, UDIM), jnp.float32)], axis=1)            # [H0, 8]
    w1_t = w1.T                                                              # [H1, H0]
    b1_b = jnp.broadcast_to(b1.T, (H1, CHUNK))                               # [H1, CHUNK]
    wo_tp = wo.T[_PERM]                                                      # [12, H1]
    bo_b = jnp.broadcast_to(bo.reshape(-1)[_PERM][:, None], (QDIM * UDIM, CHUNK))

    grid = (pl.cdiv(Bp, TB),)

    f2d = pl.pallas_call(
        _force_kernel,
        out_shape=jax.ShapeDtypeStruct((QDIM, Bp), jnp.float32),
        grid_spec=pltpu.PrefetchScalarGridSpec(
            num_scalar_prefetch=0,
            grid=grid,
            in_specs=[
                pl.BlockSpec((N_IN, TB), lambda i: (0, i)),
                pl.BlockSpec(w0_aug.shape, lambda i: (0, 0)),
                pl.BlockSpec(w1_t.shape, lambda i: (0, 0)),
                pl.BlockSpec(b1_b.shape, lambda i: (0, 0)),
                pl.BlockSpec(wo_tp.shape, lambda i: (0, 0)),
                pl.BlockSpec(bo_b.shape, lambda i: (0, 0)),
            ],
            out_specs=pl.BlockSpec((QDIM, TB), lambda i: (0, i)),
        ),
        compiler_params=pltpu.CompilerParams(
            dimension_semantics=("parallel",)),   # batch axis -> megacore shardable
    )(x, w0_aug, w1_t, b1_b, wo_tp, bo_b)

    if pad:
        f2d = f2d[:, :B]
    # Restore torch layout [B, QDIM, 1].
    return f2d.T.reshape(B, QDIM, 1)


def _reference(q, u, w0, b0, w1, b1, wo, bo):
    """Pure-JAX reference of the same forward pass (for a correctness check)."""
    h = jnp.tanh(q @ w0 + b0)
    h = h + jnp.tanh(h @ w1 + b1)
    bmat = (h @ wo + bo).reshape(q.shape[0], QDIM, UDIM)
    return bmat @ u[:, :, None]


if __name__ == "__main__":
    key = jax.random.PRNGKey(0)
    kq, kv, ku, kp = jax.random.split(key, 4)

    params = init_params(kp)

    # Small batch (single grid step, single lane chunk; tiny-batch pad path).
    B = 8
    q = jax.random.normal(kq, (B, QDIM), jnp.float32)
    v = jax.random.normal(kv, (B, QDIM), jnp.float32)   # unused by forward
    u = jax.random.normal(ku, (B, UDIM), jnp.float32)

    F = jax.block_until_ready(control_affine_force(q, v, u, *params))
    assert F.shape == (B, QDIM, 1), F.shape
    F_ref = _reference(q, u, *params)
    assert jnp.allclose(F, F_ref, atol=1e-5, rtol=1e-5), (
        jnp.max(jnp.abs(F - F_ref)))

    # Batch that is not a multiple of the lane tile: exercises the unpadded
    # ragged final block (masked writeback) and a 2-step "parallel" grid.
    B2 = 300
    kq2, ku2 = jax.random.split(kv)
    q2 = jax.random.normal(kq2, (B2, QDIM), jnp.float32)
    v2 = jnp.zeros((B2, QDIM), jnp.float32)
    u2 = jax.random.normal(ku2, (B2, UDIM), jnp.float32)

    F2 = jax.block_until_ready(control_affine_force(q2, v2, u2, *params))
    assert F2.shape == (B2, QDIM, 1), F2.shape
    F2_ref = _reference(q2, u2, *params)
    assert jnp.allclose(F2, F2_ref, atol=1e-5, rtol=1e-5), (
        jnp.max(jnp.abs(F2 - F2_ref)))

    # Larger batch: multi-chunk inner loop (TB > CHUNK) + multi-step grid.
    B3 = 3000
    kq3, ku3 = jax.random.split(ku)
    q3 = jax.random.normal(kq3, (B3, QDIM), jnp.float32)
    v3 = jnp.zeros((B3, QDIM), jnp.float32)
    u3 = jax.random.normal(ku3, (B3, UDIM), jnp.float32)

    F3 = jax.block_until_ready(control_affine_force(q3, v3, u3, *params))
    assert F3.shape == (B3, QDIM, 1), F3.shape
    F3_ref = _reference(q3, u3, *params)
    assert jnp.allclose(F3, F3_ref, atol=1e-5, rtol=1e-5), (
        jnp.max(jnp.abs(F3 - F3_ref)))

    print("KERNEL_OK")
</pallas_src>

<mosaic_0001>
module attributes {stable_mosaic.version = 11 : i64} {
  func.func @_force_kernel(%arg0: i32, %arg1: memref<8x256xf32, #tpu.memory_space<vmem>>, %arg2: memref<32x8xf32, #tpu.memory_space<vmem>>, %arg3: memref<32x32xf32, #tpu.memory_space<vmem>>, %arg4: memref<32x256xf32, #tpu.memory_space<vmem>>, %arg5: memref<12x32xf32, #tpu.memory_space<vmem>>, %arg6: memref<12x256xf32, #tpu.memory_space<vmem>>, %arg7: memref<4x256xf32, #tpu.memory_space<vmem>>) attributes {dimension_semantics = [#tpu.dimension_semantics<parallel>], iteration_bounds = array<i64: 1>, scalar_prefetch = 0 : i64, scratch_operands = 0 : i64, tpu.core_type = #tpu.core_type<tc>, window_params = [{transform_indices = @transform_0, window_bounds = array<i64: 8, 256>}, {pipeline_mode = #tpu.pipeline_mode<synchronous>, transform_indices = @transform_1, window_bounds = array<i64: 32, 8>}, {pipeline_mode = #tpu.pipeline_mode<synchronous>, transform_indices = @transform_2, window_bounds = array<i64: 32, 32>}, {pipeline_mode = #tpu.pipeline_mode<synchronous>, transform_indices = @transform_3, window_bounds = array<i64: 32, 256>}, {pipeline_mode = #tpu.pipeline_mode<synchronous>, transform_indices = @transform_4, window_bounds = array<i64: 12, 32>}, {pipeline_mode = #tpu.pipeline_mode<synchronous>, transform_indices = @transform_5, window_bounds = array<i64: 12, 256>}, {transform_indices = @transform_6, window_bounds = array<i64: 4, 256>}]} {
    %c0 = arith.constant 0 : index
    %c0_0 = arith.constant 0 : index
    %0 = vector.load %arg2[%c0, %c0_0] : memref<32x8xf32, #tpu.memory_space<vmem>>, vector<32x8xf32>
    %c0_1 = arith.constant 0 : index
    %c0_2 = arith.constant 0 : index
    %1 = vector.load %arg3[%c0_1, %c0_2] : memref<32x32xf32, #tpu.memory_space<vmem>>, vector<32x32xf32>
    %c0_3 = arith.constant 0 : index
    %c0_4 = arith.constant 0 : index
    %2 = vector.load %arg4[%c0_3, %c0_4] : memref<32x256xf32, #tpu.memory_space<vmem>>, vector<32x256xf32>
    %c0_5 = arith.constant 0 : index
    %c0_6 = arith.constant 0 : index
    %3 = vector.load %arg5[%c0_5, %c0_6] : memref<12x32xf32, #tpu.memory_space<vmem>>, vector<12x32xf32>
    %c0_7 = arith.constant 0 : index
    %c0_8 = arith.constant 0 : index
    %4 = vector.load %arg6[%c0_7, %c0_8] : memref<12x256xf32, #tpu.memory_space<vmem>>, vector<12x256xf32>
    %c0_9 = arith.constant 0 : index
    %c0_10 = arith.constant 0 : index
    %5 = vector.load %arg1[%c0_9, %c0_10] : memref<8x256xf32, #tpu.memory_space<vmem>>, vector<8x256xf32>
    %cst = arith.constant dense<0.000000e+00> : vector<32x256xf32>
    %6 = tpu.matmul %0, %5, %cst {dimension_numbers = #tpu.dot_dimension_numbers<[1], [0], [0], [1], [0, 0, 1, 1], [], []>} : vector<32x8xf32>, vector<8x256xf32>, vector<32x256xf32> -> vector<32x256xf32>
    %7 = math.tanh %6 : vector<32x256xf32>
    %cst_11 = arith.constant dense<0.000000e+00> : vector<32x256xf32>
    %8 = tpu.matmul %1, %7, %cst_11 {dimension_numbers = #tpu.dot_dimension_numbers<[1], [0], [0], [1], [0, 0, 1, 1], [], []>} : vector<32x32xf32>, vector<32x256xf32>, vector<32x256xf32> -> vector<32x256xf32>
    %9 = arith.addf %8, %2 : vector<32x256xf32>
    %10 = math.tanh %9 : vector<32x256xf32>
    %11 = arith.addf %7, %10 : vector<32x256xf32>
    %cst_12 = arith.constant dense<0.000000e+00> : vector<12x256xf32>
    %12 = tpu.matmul %3, %11, %cst_12 {dimension_numbers = #tpu.dot_dimension_numbers<[1], [0], [0], [1], [0, 0, 1, 1], [], []>} : vector<12x32xf32>, vector<32x256xf32>, vector<12x256xf32> -> vector<12x256xf32>
    %13 = arith.addf %12, %4 : vector<12x256xf32>
    %14 = vector.extract_strided_slice %13 {offsets = [0, 0], sizes = [4, 256], strides = [1, 1]} : vector<12x256xf32> to vector<4x256xf32>
    %15 = vector.extract_strided_slice %5 {offsets = [5, 0], sizes = [1, 256], strides = [1, 1]} : vector<8x256xf32> to vector<1x256xf32>
    %16 = vector.broadcast %15 : vector<1x256xf32> to vector<4x256xf32>
    %17 = arith.mulf %14, %16 : vector<4x256xf32>
    %18 = vector.extract_strided_slice %13 {offsets = [4, 0], sizes = [4, 256], strides = [1, 1]} : vector<12x256xf32> to vector<4x256xf32>
    %19 = vector.extract_strided_slice %5 {offsets = [6, 0], sizes = [1, 256], strides = [1, 1]} : vector<8x256xf32> to vector<1x256xf32>
    %20 = vector.broadcast %19 : vector<1x256xf32> to vector<4x256xf32>
    %21 = arith.mulf %18, %20 : vector<4x256xf32>
    %22 = arith.addf %17, %21 : vector<4x256xf32>
    %23 = vector.extract_strided_slice %13 {offsets = [8, 0], sizes = [4, 256], strides = [1, 1]} : vector<12x256xf32> to vector<4x256xf32>
    %24 = vector.extract_strided_slice %5 {offsets = [7, 0], sizes = [1, 256], strides = [1, 1]} : vector<8x256xf32> to vector<1x256xf32>
    %25 = vector.broadcast %24 : vector<1x256xf32> to vector<4x256xf32>
    %26 = arith.mulf %23, %25 : vector<4x256xf32>
    %27 = arith.addf %22, %26 : vector<4x256xf32>
    %c0_13 = arith.constant 0 : index
    %c0_14 = arith.constant 0 : index
    %28 = vector.load %arg7[%c0_13, %c0_14] : memref<4x256xf32, #tpu.memory_space<vmem>>, vector<4x256xf32>
    tpu.vector_store %arg7[%c0_13, %c0_14], %27 {strides = array<i32>} : memref<4x256xf32, #tpu.memory_space<vmem>>, vector<4x256xf32>,
    return
  }
  func.func @transform_0(%arg0: i32) -> (i32, i32) {
    %c0_i32 = arith.constant 0 : i32
    %c0_i32_0 = arith.constant 0 : i32
    return %c0_i32, %arg0 : i32, i32
  }
  func.func @transform_1(%arg0: i32) -> (i32, i32) {
    %c0_i32 = arith.constant 0 : i32
    %c0_i32_0 = arith.constant 0 : i32
    %c0_i32_1 = arith.constant 0 : i32
    return %c0_i32, %c0_i32_0 : i32, i32
  }
  func.func @transform_2(%arg0: i32) -> (i32, i32) {
    %c0_i32 = arith.constant 0 : i32
    %c0_i32_0 = arith.constant 0 : i32
    %c0_i32_1 = arith.constant 0 : i32
    return %c0_i32, %c0_i32_0 : i32, i32
  }
  func.func @transform_3(%arg0: i32) -> (i32, i32) {
    %c0_i32 = arith.constant 0 : i32
    %c0_i32_0 = arith.constant 0 : i32
    %c0_i32_1 = arith.constant 0 : i32
    return %c0_i32, %c0_i32_0 : i32, i32
  }
  func.func @transform_4(%arg0: i32) -> (i32, i32) {
    %c0_i32 = arith.constant 0 : i32
    %c0_i32_0 = arith.constant 0 : i32
    %c0_i32_1 = arith.constant 0 : i32
    return %c0_i32, %c0_i32_0 : i32, i32
  }
  func.func @transform_5(%arg0: i32) -> (i32, i32) {
    %c0_i32 = arith.constant 0 : i32
    %c0_i32_0 = arith.constant 0 : i32
    %c0_i32_1 = arith.constant 0 : i32
    return %c0_i32, %c0_i32_0 : i32, i32
  }
  func.func @transform_6(%arg0: i32) -> (i32, i32) {
    %c0_i32 = arith.constant 0 : i32
    %c0_i32_0 = arith.constant 0 : i32
    return %c0_i32, %arg0 : i32, i32
  }
}

</mosaic_0001>

<llo_original>
// kernel: control_affine_force.1
$region0: #{control_affine_force.1}
  #allocation0 [shape = 'u32[]', space=smem, size = 0x4, offset = 0x4, fixed_abs, tag = 'smem constant byte address 0x4 - core index']
  #allocation1 [shape = 'u32[144,128]{1,0:T(1,128)}', space=vmem, size = 0x12000, scoped, tag = 'internal scratch']
  %s0 = inlined_call_operand.vmem [shape: f32[8,256], index: 0, kind: input, shape index: {}]
  %s1 = inlined_call_operand.vmem [shape: f32[32,8], index: 1, kind: input, shape index: {}]
  %s2 = inlined_call_operand.vmem [shape: f32[32,32], index: 2, kind: input, shape index: {}]
  %s3 = inlined_call_operand.vmem [shape: f32[32,256], index: 3, kind: input, shape index: {}]
  %s4 = inlined_call_operand.vmem [shape: f32[12,32], index: 4, kind: input, shape index: {}]
  %s5 = inlined_call_operand.vmem [shape: f32[12,256], index: 5, kind: input, shape index: {}]
  %s6 = inlined_call_operand.vmem [shape: f32[4,256], index: 6, kind: output, shape index: {}]
  %s7 = sld [smem:[#allocation0]]
  $region34: #{control_affine_force.1} parent=0
    _
  %s9 = ssub.s32 1, %s7
  %s10 = scalar_select 0, %s9, %s7
  // Predicated region
  $region2: #{control_affine_force.1} parent=0 // pred_check
    _
  $region3: #{control_affine_force.1} parent=0 // pred_check_branch
    %12 = sbr.rel (0) target = $region5
  $region4: #{control_affine_force.1} parent=0 // pred_region
    _
  $region5: #{control_affine_force.1} parent=0 // pred_fallthru
    _
  // Predicated region
  $region6: #{control_affine_force.1} parent=0 // pred_check
    _
  $region7: #{control_affine_force.1} parent=0 // pred_check_branch
    %14 = sbr.rel (0) target = $region9
  $region8: #{control_affine_force.1} parent=0 // pred_region
    _
  $region9: #{control_affine_force.1} parent=0 // pred_fallthru
    _
  // Predicated region
  $region10: #{control_affine_force.1} parent=0 // pred_check
    _
  $region11: #{control_affine_force.1} parent=0 // pred_check_branch
    %16 = sbr.rel (0) target = $region13
  $region12: #{control_affine_force.1} parent=0 // pred_region
    _
  $region13: #{control_affine_force.1} parent=0 // pred_fallthru
    _
  // Predicated region
  $region14: #{control_affine_force.1} parent=0 // pred_check
    _
  $region15: #{control_affine_force.1} parent=0 // pred_check_branch
    %18 = sbr.rel (0) target = $region17
  $region16: #{control_affine_force.1} parent=0 // pred_region
    _
  $region17: #{control_affine_force.1} parent=0 // pred_fallthru
    _
  // Predicated region
  $region18: #{control_affine_force.1} parent=0 // pred_check
    _
  $region19: #{control_affine_force.1} parent=0 // pred_check_branch
    %20 = sbr.rel (0) target = $region21
  $region20: #{control_affine_force.1} parent=0 // pred_region
    _
  $region21: #{control_affine_force.1} parent=0 // pred_fallthru
    _
  // Predicated region
  $region22: #{control_affine_force.1} parent=0 // pred_check
    _
  $region23: #{control_affine_force.1} parent=0 // pred_check_branch
    %22 = sbr.rel (0) target = $region25
  $region24: #{control_affine_force.1} parent=0 // pred_region
    _
  $region25: #{control_affine_force.1} parent=0 // pred_fallthru
    _
  %v23 = vld [vmem:[%s1] sm:$0xff]
  %v24 = vld [vmem:[%s1 + $0x8] sm:$0xff]
  %v25 = vld [vmem:[%s1 + $0x10] sm:$0xff]
  %v26 = vld [vmem:[%s1 + $0x18] sm:$0xff]
  %v27 = vld [vmem:[%s2] sm:$0xff]
  %v28 = vld [vmem:[%s2 + $0x8] sm:$0xff]
  %v29 = vld [vmem:[%s2 + $0x10] sm:$0xff]
  %v30 = vld [vmem:[%s2 + $0x18] sm:$0xff]
  %v31 = vld [vmem:[%s3] sm:$0xff]
  %v32 = vld [vmem:[%s3 + $0x8] sm:$0xff]
  %v33 = vld [vmem:[%s3 + $0x10] sm:$0xff]
  %v34 = vld [vmem:[%s3 + $0x18] sm:$0xff]
  %v35 = vld [vmem:[%s3 + $0x20] sm:$0xff]
  %v36 = vld [vmem:[%s3 + $0x28] sm:$0xff]
  %v37 = vld [vmem:[%s3 + $0x30] sm:$0xff]
  %v38 = vld [vmem:[%s3 + $0x38] sm:$0xff]
  %v39 = vld [vmem:[%s4] sm:$0xff]
  %v40 = vld [vmem:[%s4 + $0x8] sm:$0xf]
  %v41 = vld [vmem:[%s5] sm:$0xff]
  %v42 = vld [vmem:[%s5 + $0x8] sm:$0xff]
  %v43 = vld [vmem:[%s5 + $0x10] sm:$0xf]
  %v44 = vld [vmem:[%s5 + $0x18] sm:$0xf]
  %v45 = vld [vmem:[%s0] sm:$0xff]
  %v46 = vld [vmem:[%s0 + $0x8] sm:$0xff]
  %vm47 = vcmask 64512
  %v49 = vsel %vm47, %v23, 0
  %v52 = vsel %vm47, %v24, 0
  %v55 = vsel %vm47, %v25, 0
  %v58 = vsel %vm47, %v26, 0
  %60 = vmatprep.subr.mxu0 %v46
  %61 = vmatpush1.msra.mxu0 %v45
  %62 = vmatprep.subr.mxu0 0.0
  %63 = vmatpush1.msra.mxu0 0.0
  %64 = vmatprep.subr.mxu0 0.0
  %65 = vmatpush1.msra.mxu0 0.0
  %66 = vmatprep.subr.mxu0 0.0
  %67 = vmatpush1.msra.mxu0 0.0
  %68 = vmatprep.subr.mxu0 0.0
  %69 = vmatpush1.msra.mxu0 0.0
  %70 = vmatprep.subr.mxu0 0.0
  %71 = vmatpush1.msra.mxu0 0.0
  %72 = vmatprep.subr.mxu0 0.0
  %73 = vmatpush1.msra.mxu0 0.0
  %74 = vmatprep.subr.mxu0 0.0
  %75 = vmatpush1.msra.mxu0 0.0
  %76 = vmatprep.subr.mxu0 0.0
  %77 = vmatpush1.msra.mxu0 0.0
  %78 = vmatprep.subr.mxu0 0.0
  %79 = vmatpush1.msra.mxu0 0.0
  %80 = vmatprep.subr.mxu0 0.0
  %81 = vmatpush1.msra.mxu0 0.0
  %82 = vmatprep.subr.mxu0 0.0
  %83 = vmatpush1.msra.mxu0 0.0
  %84 = vmatprep.subr.mxu0 0.0
  %85 = vmatpush1.msra.mxu0 0.0
  %86 = vmatprep.subr.mxu0 0.0
  %87 = vmatpush1.msra.mxu0 0.0
  %88 = vmatprep.subr.mxu0 0.0
  %89 = vmatpush1.msra.mxu0 0.0
  %90 = vmatprep.subr.mxu0 0.0
  %91 = vmatpush1.msra.mxu0 0.0
  %92 = vmatprep.subr.mxu0 0.0
  %93 = vmatpush1.msra.mxu0 0.0
  %94 = vmatprep.subr.mxu0 0.0
  %95 = vmatpush1.msra.mxu0 0.0
  %96 = vmatprep.subr.mxu0 0.0
  %97 = vmatpush1.msra.mxu0 0.0
  %98 = vmatprep.subr.mxu0 0.0
  %99 = vmatpush1.msra.mxu0 0.0
  %100 = vmatprep.subr.mxu0 0.0
  %101 = vmatpush1.msra.mxu0 0.0
  %102 = vmatprep.subr.mxu0 0.0
  %103 = vmatpush1.msra.mxu0 0.0
  %104 = vmatprep.subr.mxu0 0.0
  %105 = vmatpush1.msra.mxu0 0.0
  %106 = vmatprep.subr.mxu0 0.0
  %107 = vmatpush1.msra.mxu0 0.0
  %108 = vmatprep.subr.mxu0 0.0
  %109 = vmatpush1.msra.mxu0 0.0
  %110 = vmatprep.subr.mxu0 0.0
  %111 = vmatpush1.msra.mxu0 0.0
  %112 = vmatprep.subr.mxu0 0.0
  %113 = vmatpush1.msra.mxu0 0.0
  %114 = vmatprep.subr.mxu0 0.0
  %115 = vmatpush1.msra.mxu0 0.0
  %116 = vmatprep.subr.mxu0 0.0
  %117 = vmatpush1.msra.mxu0 0.0
  %118 = vmatprep.subr.mxu0 0.0
  %119 = vmatpush1.msra.mxu0 0.0
  %120 = vmatprep.subr.mxu0 0.0
  %121 = vmatpush1.msra.mxu0 0.0
  %122 = vmatprep.subr.mxu0 0.0
  %123 = vmatpush1.msra.mxu0 0.0
  %124 = vmatprep.mubr.f32.mxu0 0.0
  %125 = vmatmul.mubr.f32.gmra.mrb[0].mxu0 %v49
  %v126 = vpop.f32.mrb[0].mxu0
  %v127 = vadd.f32 0.0, %v126
  %v128 = vpop.f32.mrb[0].mxu0
  %v129 = vadd.f32 0.0, %v128
  %130 = vmatprep.mubr.f32.mxu0 0.0
  %131 = vmatmul.mubr.f32.gmra.mrb[0].mxu0 %v52
  %v132 = vpop.f32.mrb[0].mxu0
  %v133 = vadd.f32 0.0, %v132
  %v134 = vpop.f32.mrb[0].mxu0
  %v135 = vadd.f32 0.0, %v134
  %136 = vmatprep.mubr.f32.mxu0 0.0
  %137 = vmatmul.mubr.f32.gmra.mrb[0].mxu0 %v55
  %v138 = vpop.f32.mrb[0].mxu0
  %v139 = vadd.f32 0.0, %v138
  %v140 = vpop.f32.mrb[0].mxu0
  %v141 = vadd.f32 0.0, %v140
  %142 = vmatprep.mubr.f32.mxu0 0.0
  %143 = vmatmul.mubr.f32.gmra.mrb[0].mxu0 %v58
  %v144 = vpop.f32.mrb[0].mxu0
  %v145 = vadd.f32 0.0, %v144
  %v146 = vpop.f32.mrb[0].mxu0
  %v147 = vadd.f32 0.0, %v146
  %148 = vdwg.mxu0
  %v149 = vtanh.pop %v127
  %v150 = vtanh.pop %v129
  %v151 = vtanh.pop %v133
  %v152 = vtanh.pop %v135
  %v153 = vtanh.pop %v139
  %v154 = vtanh.pop %v141
  %v155 = vtanh.pop %v145
  %v156 = vtanh.pop %v147
  %vm157 = vcmask 261120
  %v159 = vsel %vm157, %v27, 0
  %v162 = vsel %vm157, %v28, 0
  %v165 = vsel %vm157, %v29, 0
  %v168 = vsel %vm157, %v30, 0
  %170 = vmatprep.subr.mxu0 %v150
  %171 = vmatpush1.msra.mxu0 %v149
  %172 = vmatprep.subr.mxu0 %v152
  %173 = vmatpush1.msra.mxu0 %v151
  %174 = vmatprep.subr.mxu0 %v154
  %175 = vmatpush1.msra.mxu0 %v153
  %176 = vmatprep.subr.mxu0 %v156
  %177 = vmatpush1.msra.mxu0 %v155
  %178 = vmatprep.subr.mxu0 0.0
  %179 = vmatpush1.msra.mxu0 0.0
  %180 = vmatprep.subr.mxu0 0.0
  %181 = vmatpush1.msra.mxu0 0.0
  %182 = vmatprep.subr.mxu0 0.0
  %183 = vmatpush1.msra.mxu0 0.0
  %184 = vmatprep.subr.mxu0 0.0
  %185 = vmatpush1.msra.mxu0 0.0
  %186 = vmatprep.subr.mxu0 0.0
  %187 = vmatpush1.msra.mxu0 0.0
  %188 = vmatprep.subr.mxu0 0.0
  %189 = vmatpush1.msra.mxu0 0.0
  %190 = vmatprep.subr.mxu0 0.0
  %191 = vmatpush1.msra.mxu0 0.0
  %192 = vmatprep.subr.mxu0 0.0
  %193 = vmatpush1.msra.mxu0 0.0
  %194 = vmatprep.subr.mxu0 0.0
  %195 = vmatpush1.msra.mxu0 0.0
  %196 = vmatprep.subr.mxu0 0.0
  %197 = vmatpush1.msra.mxu0 0.0
  %198 = vmatprep.subr.mxu0 0.0
  %199 = vmatpush1.msra.mxu0 0.0
  %200 = vmatprep.subr.mxu0 0.0
  %201 = vmatpush1.msra.mxu0 0.0
  %202 = vmatprep.subr.mxu0 0.0
  %203 = vmatpush1.msra.mxu0 0.0
  %204 = vmatprep.subr.mxu0 0.0
  %205 = vmatpush1.msra.mxu0 0.0
  %206 = vmatprep.subr.mxu0 0.0
  %207 = vmatpush1.msra.mxu0 0.0
  %208 = vmatprep.subr.mxu0 0.0
  %209 = vmatpush1.msra.mxu0 0.0
  %210 = vmatprep.subr.mxu0 0.0
  %211 = vmatpush1.msra.mxu0 0.0
  %212 = vmatprep.subr.mxu0 0.0
  %213 = vmatpush1.msra.mxu0 0.0
  %214 = vmatprep.subr.mxu0 0.0
  %215 = vmatpush1.msra.mxu0 0.0
  %216 = vmatprep.subr.mxu0 0.0
  %217 = vmatpush1.msra.mxu0 0.0
  %218 = vmatprep.subr.mxu0 0.0
  %219 = vmatpush1.msra.mxu0 0.0
  %220 = vmatprep.subr.mxu0 0.0
  %221 = vmatpush1.msra.mxu0 0.0
  %222 = vmatprep.subr.mxu0 0.0
  %223 = vmatpush1.msra.mxu0 0.0
  %224 = vmatprep.subr.mxu0 0.0
  %225 = vmatpush1.msra.mxu0 0.0
  %226 = vmatprep.subr.mxu0 0.0
  %227 = vmatpush1.msra.mxu0 0.0
  %228 = vmatprep.subr.mxu0 0.0
  %229 = vmatpush1.msra.mxu0 0.0
  %230 = vmatprep.subr.mxu0 0.0
  %231 = vmatpush1.msra.mxu0 0.0
  %232 = vmatprep.subr.mxu0 0.0
  %233 = vmatpush1.msra.mxu0 0.0
  %234 = vmatprep.mubr.f32.mxu0 0.0
  %235 = vmatmul.mubr.f32.gmra.mrb[0].mxu0 %v159
  %v236 = vpop.f32.mrb[0].mxu0
  %v237 = vadd.f32 %v31, %v236
  %v238 = vpop.f32.mrb[0].mxu0
  %v239 = vadd.f32 %v32, %v238
  %240 = vmatprep.mubr.f32.mxu0 0.0
  %241 = vmatmul.mubr.f32.gmra.mrb[0].mxu0 %v162
  %v242 = vpop.f32.mrb[0].mxu0
  %v243 = vadd.f32 %v33, %v242
  %v244 = vpop.f32.mrb[0].mxu0
  %v245 = vadd.f32 %v34, %v244
  %246 = vmatprep.mubr.f32.mxu0 0.0
  %247 = vmatmul.mubr.f32.gmra.mrb[0].mxu0 %v165
  %v248 = vpop.f32.mrb[0].mxu0
  %v249 = vadd.f32 %v35, %v248
  %v250 = vpop.f32.mrb[0].mxu0
  %v251 = vadd.f32 %v36, %v250
  %252 = vmatprep.mubr.f32.mxu0 0.0
  %253 = vmatmul.mubr.f32.gmra.mrb[0].mxu0 %v168
  %v254 = vpop.f32.mrb[0].mxu0
  %v255 = vadd.f32 %v37, %v254
  %v256 = vpop.f32.mrb[0].mxu0
  %v257 = vadd.f32 %v38, %v256
  %258 = vdwg.mxu0
  %v259 = vtanh.pop %v237
  %v260 = vtanh.pop %v239
  %v261 = vtanh.pop %v243
  %v262 = vtanh.pop %v245
  %v263 = vtanh.pop %v249
  %v264 = vtanh.pop %v251
  %v265 = vtanh.pop %v255
  %v266 = vtanh.pop %v257
  %v267 = vadd.f32 %v149, %v259
  %v268 = vadd.f32 %v150, %v260
  %v269 = vadd.f32 %v151, %v261
  %v270 = vadd.f32 %v152, %v262
  %v271 = vadd.f32 %v153, %v263
  %v272 = vadd.f32 %v154, %v264
  %v273 = vadd.f32 %v155, %v265
  %v274 = vadd.f32 %v156, %v266
  %v276 = vsel %vm157, %v39, 0
  %v279 = vsel %vm157, %v40, 0
  %281 = vmatprep.subr.mxu0 %v268
  %282 = vmatpush1.msra.mxu0 %v267
  %283 = vmatprep.subr.mxu0 %v270
  %284 = vmatpush1.msra.mxu0 %v269
  %285 = vmatprep.subr.mxu0 %v272
  %286 = vmatpush1.msra.mxu0 %v271
  %287 = vmatprep.subr.mxu0 %v274
  %288 = vmatpush1.msra.mxu0 %v273
  %289 = vmatprep.subr.mxu0 0.0
  %290 = vmatpush1.msra.mxu0 0.0
  %291 = vmatprep.subr.mxu0 0.0
  %292 = vmatpush1.msra.mxu0 0.0
  %293 = vmatprep.subr.mxu0 0.0
  %294 = vmatpush1.msra.mxu0 0.0
  %295 = vmatprep.subr.mxu0 0.0
  %296 = vmatpush1.msra.mxu0 0.0
  %297 = vmatprep.subr.mxu0 0.0
  %298 = vmatpush1.msra.mxu0 0.0
  %299 = vmatprep.subr.mxu0 0.0
  %300 = vmatpush1.msra.mxu0 0.0
  %301 = vmatprep.subr.mxu0 0.0
  %302 = vmatpush1.msra.mxu0 0.0
  %303 = vmatprep.subr.mxu0 0.0
  %304 = vmatpush1.msra.mxu0 0.0
  %305 = vmatprep.subr.mxu0 0.0
  %306 = vmatpush1.msra.mxu0 0.0
  %307 = vmatprep.subr.mxu0 0.0
  %308 = vmatpush1.msra.mxu0 0.0
  %309 = vmatprep.subr.mxu0 0.0
  %310 = vmatpush1.msra.mxu0 0.0
  %311 = vmatprep.subr.mxu0 0.0
  %312 = vmatpush1.msra.mxu0 0.0
  %313 = vmatprep.subr.mxu0 0.0
  %314 = vmatpush1.msra.mxu0 0.0
  %315 = vmatprep.subr.mxu0 0.0
  %316 = vmatpush1.msra.mxu0 0.0
  %317 = vmatprep.subr.mxu0 0.0
  %318 = vmatpush1.msra.mxu0 0.0
  %319 = vmatprep.subr.mxu0 0.0
  %320 = vmatpush1.msra.mxu0 0.0
  %321 = vmatprep.subr.mxu0 0.0
  %322 = vmatpush1.msra.mxu0 0.0
  %323 = vmatprep.subr.mxu0 0.0
  %324 = vmatpush1.msra.mxu0 0.0
  %325 = vmatprep.subr.mxu0 0.0
  %326 = vmatpush1.msra.mxu0 0.0
  %327 = vmatprep.subr.mxu0 0.0
  %328 = vmatpush1.msra.mxu0 0.0
  %329 = vmatprep.subr.mxu0 0.0
  %330 = vmatpush1.msra.mxu0 0.0
  %331 = vmatprep.subr.mxu0 0.0
  %332 = vmatpush1.msra.mxu0 0.0
  %333 = vmatprep.subr.mxu0 0.0
  %334 = vmatpush1.msra.mxu0 0.0
  %335 = vmatprep.subr.mxu0 0.0
  %336 = vmatpush1.msra.mxu0 0.0
  %337 = vmatprep.subr.mxu0 0.0
  %338 = vmatpush1.msra.mxu0 0.0
  %339 = vmatprep.subr.mxu0 0.0
  %340 = vmatpush1.msra.mxu0 0.0
  %341 = vmatprep.subr.mxu0 0.0
  %342 = vmatpush1.msra.mxu0 0.0
  %343 = vmatprep.subr.mxu0 0.0
  %344 = vmatpush1.msra.mxu0 0.0
  %345 = vmatprep.mubr.f32.mxu0 0.0
  %346 = vmatmul.mubr.f32.gmra.mrb[0].mxu0 %v276
  %v347 = vpop.f32.mrb[0].mxu0
  %v348 = vadd.f32 %v41, %v347
  %v349 = vpop.f32.mrb[0].mxu0
  %v350 = vadd.f32 %v42, %v349
  %351 = vmatprep.mubr.f32.mxu0 0.0
  %352 = vmatmul.mubr.f32.gmra.mrb[0].mxu0 %v279
  %v353 = vpop.f32.mrb[0].mxu0
  %v354 = vadd.f32 %v43, %v353
  %v355 = vpop.f32.mrb[0].mxu0
  %v356 = vadd.f32 %v44, %v355
  %357 = vdwg.mxu0
  %v358 = vlaneseq
  %v359 = vshrl.u32 %v358, 7
  %v360 = vsub.s32 5, %v359
  %v361 = vrot.slane %v45, %v360
  %v362 = vlaneseq
  %v363 = vshrl.u32 %v362, 7
  %v364 = vsub.s32 5, %v363
  %v365 = vrot.slane %v46, %v364
  %v366 = vmul.f32 %v348, %v361
  %v367 = vmul.f32 %v350, %v365
  %v368 = vlaneseq
  %v369 = vshrl.u32 %v368, 7
  %v370 = vsub.s32 6, %v369
  %v371 = vrot.slane %v45, %v370
  %v372 = vlaneseq
  %v373 = vshrl.u32 %v372, 7
  %v374 = vsub.s32 6, %v373
  %v375 = vrot.slane %v46, %v374
  %v376 = vmul.f32 %v348, %v371
  %v377 = vmul.f32 %v350, %v375
  %v380 = vrot.slane %v376, 4
  %v381 = vrot.slane %v377, 4
  %v384 = vadd.f32 %v366, %v380
  %v385 = vadd.f32 %v367, %v381
  %v386 = vlaneseq
  %v387 = vshrl.u32 %v386, 7
  %v388 = vsub.s32 7, %v387
  %v389 = vrot.slane %v45, %v388
  %v390 = vlaneseq
  %v391 = vshrl.u32 %v390, 7
  %v392 = vsub.s32 7, %v391
  %v393 = vrot.slane %v46, %v392
  %v394 = vmul.f32 %v354, %v389
  %v395 = vmul.f32 %v356, %v393
  %v396 = vadd.f32 %v384, %v394
  %v397 = vadd.f32 %v385, %v395
  %v400 = vcombine.low %v396, %v397
  %402 = vst [vmem:[%s6] sm:$0xff] %v400
  // Predicated region
  $region26: #{control_affine_force.1} parent=0 // pred_check
    _
  $region27: #{control_affine_force.1} parent=0 // pred_check_branch
    %404 = sbr.rel (0) target = $region29
  $region28: #{control_affine_force.1} parent=0 // pred_region
    _
  $region29: #{control_affine_force.1} parent=0 // pred_fallthru
    _
  // Predicated region
  $region30: #{control_affine_force.1} parent=0 // pred_check
    _
  $region31: #{control_affine_force.1} parent=0 // pred_check_branch
    %406 = sbr.rel (0) target = $region33
  $region32: #{control_affine_force.1} parent=0 // pred_region
    _
  $region33: #{control_affine_force.1} parent=0 // pred_fallthru
    _

</llo_original>
